<compile_context>
chip_gen: v7x
topology: tpu7x:2x2x1
jax: 0.10.0
libtpu: 0.0.40
codegen_flags: <defaults>
</compile_context>

<pallas_src>
import functools

import jax
import jax.numpy as jnp
from jax.experimental import pallas as pl
from jax.experimental.pallas import tpu as pltpu

VMEM_SPEC = pl.BlockSpec(memory_space=pltpu.MemorySpace.VMEM)

CONV_DIMS = [(1, 64), (64, 64), (64, 64), (64, 32), (32, 32), (32, 16)]
LIN1_DIMS = (16, 16)
LIN2_DIMS = (16, 2)
LANE = 128


# --------------------------- parameter slab layout ---------------------------

def _build_param_layout():
    """Static row layout of the packed [rows, 128] parameter slab.

    Every block starts at an 8-row (sublane-tile) boundary so in-kernel static
    slices never cross a (8,128) tile edge.
    """
    layout = {}
    row = 0

    def add(name, r, c):
        nonlocal row
        layout[name] = (row, r, c)
        row = ((row + r + 7) // 8) * 8

    for i, (fi, fo) in enumerate(CONV_DIMS):
        add(f"w{i + 1}", fi, fo)
        add(f"b{i + 1}", 1, fo)
    add("lw1", LIN1_DIMS[0], LIN1_DIMS[1])
    add("lb1", 1, LIN1_DIMS[1])
    add("lw2", LIN2_DIMS[0], LIN2_DIMS[1])
    add("lb2", 1, LIN2_DIMS[1])
    total_rows = ((row + 7) // 8) * 8
    return layout, total_rows


PARAM_LAYOUT, PARAM_ROWS = _build_param_layout()


def pack_params(convs, lin):
    """Pack all weights/biases into one lane-padded f32 slab (done once)."""
    lw1, lb1, lw2, lb2 = lin
    entries = {}
    for i, (w, b) in enumerate(convs):
        entries[f"w{i + 1}"] = w
        entries[f"b{i + 1}"] = b.reshape(1, -1)
    entries["lw1"] = lw1
    entries["lb1"] = lb1.reshape(1, -1)
    entries["lw2"] = lw2
    entries["lb2"] = lb2.reshape(1, -1)

    slab = jnp.zeros((PARAM_ROWS, LANE), jnp.float32)
    for name, arr in entries.items():
        r0, r, c = PARAM_LAYOUT[name]
        slab = slab.at[r0:r0 + r, 0:c].set(arr.astype(jnp.float32))
    return slab


# ------------------------------ fused kernel ---------------------------------

def _gcn2_fused_kernel(adj_ref, x_ref, mask_ref, params_ref, o_ref):
    adj = adj_ref[...]                                       # [N, N], loaded once

    def param(name):
        r0, r, c = PARAM_LAYOUT[name]
        return params_ref[r0:r0 + r, 0:c]                    # static slice

    # ---- conv1 (K=1): adj @ x first (width-1 MXU op), then VPU outer product
    ax = jnp.dot(adj, x_ref[...], preferred_element_type=jnp.float32)  # [N, 1]
    h = jnp.maximum(ax * param("w1") + param("b1"), 0.0)               # [N, 64]

    # ---- conv2..conv6: (H @ W) on the MXU, then A_hat @ (HW), bias, ReLU ----
    for i in range(2, 7):
        hw = jnp.dot(h, param(f"w{i}"), preferred_element_type=jnp.float32)
        h = jnp.maximum(
            jnp.dot(adj, hw, preferred_element_type=jnp.float32)
            + param(f"b{i}"), 0.0)
    # dropout between layers = identity in eval mode.

    # ---- global_max_pool (vectorized; fine at small G, see scaling notes) ---
    mask = mask_ref[...]                                     # [G, N]
    neg = jnp.float32(-1e30)
    pooled = jnp.max(
        jnp.where(mask[:, :, None] > 0.0, h[None, :, :], neg), axis=1)  # [G, C]
    # clamp empty-graph rows so the sentinel never reaches the MLP head
    has_nodes = jnp.sum(mask, axis=1, keepdims=True) > 0.0
    pooled = jnp.where(has_nodes, pooled, 0.0)

    # ---- MLP head: relu(lin1) then lin2 -------------------------------------
    hh = jnp.maximum(
        jnp.dot(pooled, param("lw1"), preferred_element_type=jnp.float32)
        + param("lb1"), 0.0)
    o_ref[...] = (jnp.dot(hh, param("lw2"), preferred_element_type=jnp.float32)
                  + param("lb2"))


def _cost_estimate(n, g):
    flops = 2 * n * n * 1                      # adj @ x (conv1)
    flops += 2 * n * CONV_DIMS[0][1]           # conv1 broadcast-mul + bias
    for (fi, fo) in CONV_DIMS[1:]:
        flops += 2 * n * fi * fo               # H @ W
        flops += 2 * n * n * fo                # adj @ (HW)
    flops += 2 * g * LIN1_DIMS[0] * LIN1_DIMS[1]
    flops += 2 * g * LIN2_DIMS[0] * LIN2_DIMS[1]
    bytes_accessed = 4 * (n * n + n + g * n + PARAM_ROWS * LANE + g * LIN2_DIMS[1])
    return pl.CostEstimate(flops=flops, transcendentals=0,
                           bytes_accessed=bytes_accessed)


def gcn2_fused(adj, x, mask, params_packed):
    n = adj.shape[0]
    g = mask.shape[0]
    return pl.pallas_call(
        _gcn2_fused_kernel,
        out_shape=jax.ShapeDtypeStruct((g, LIN2_DIMS[1]), jnp.float32),
        in_specs=[VMEM_SPEC] * 4,
        out_specs=VMEM_SPEC,
        cost_estimate=_cost_estimate(n, g),
    )(adj, x, mask, params_packed)


# ------------------------------- JAX glue -------------------------------------

def build_normalized_adj(edge_index, edge_weight, num_nodes):
    """Dense D^{-1/2} (A + I_remaining) D^{-1/2}, A[dst, src] = edge_weight.

    Matches PyG gcn_norm: weight-1 self loops are only added for nodes that do
    NOT already have an explicit self loop in edge_index.
    """
    src = edge_index[0]
    dst = edge_index[1]
    a = jnp.zeros((num_nodes, num_nodes), jnp.float32)
    a = a.at[dst, src].add(edge_weight.astype(jnp.float32))
    has_loop = (jnp.zeros((num_nodes,), jnp.int32)
                .at[src].max((src == dst).astype(jnp.int32)))
    a = a + jnp.diag(jnp.where(has_loop > 0, 0.0, 1.0).astype(jnp.float32))
    deg = jnp.sum(a, axis=1)                      # in-degree (target side)
    dinv = jnp.where(deg > 0, 1.0 / jnp.sqrt(deg), 0.0)
    return dinv[:, None] * a * dinv[None, :]


def glorot(key, shape):
    fan_in, fan_out = shape
    lim = jnp.sqrt(6.0 / (fan_in + fan_out))
    return jax.random.uniform(key, shape, jnp.float32, -lim, lim)


def init_params(key):
    keys = jax.random.split(key, len(CONV_DIMS) + 2)
    convs = []
    for i, (fi, fo) in enumerate(CONV_DIMS):
        convs.append((glorot(keys[i], (fi, fo)), jnp.zeros((fo,), jnp.float32)))
    lin1_w = glorot(keys[-2], LIN1_DIMS)
    lin1_b = jnp.zeros((LIN1_DIMS[1],), jnp.float32)
    lin2_w = glorot(keys[-1], LIN2_DIMS)
    lin2_b = jnp.zeros((LIN2_DIMS[1],), jnp.float32)
    return convs, (lin1_w, lin1_b, lin2_w, lin2_b)


@functools.partial(jax.jit, static_argnames=("num_graphs",))
def gcn2_forward(x, edge_index, edge_weight, batch, num_graphs, params_packed):
    """Whole forward under one jit: adj/mask build fuses with the pallas_call."""
    n = x.shape[0]
    adj = build_normalized_adj(edge_index, edge_weight, n)
    mask = (jnp.arange(num_graphs)[:, None] == batch[None, :]).astype(jnp.float32)
    return gcn2_fused(adj, x.astype(jnp.float32), mask, params_packed)


# --------------------------------- main ----------------------------------------

if __name__ == "__main__":
    key = jax.random.PRNGKey(0)
    k_param, k_x, k_edge, k_w = jax.random.split(key, 4)

    num_nodes = 12
    num_edges = 32
    num_graphs = 2

    x = jax.random.normal(k_x, (num_nodes, 1), jnp.float32)
    edge_index = jax.random.randint(k_edge, (2, num_edges), 0, num_nodes)
    edge_weight = jax.random.uniform(k_w, (num_edges,), jnp.float32, 0.5, 1.5)
    batch = jnp.array([0] * 6 + [1] * 6, jnp.int32)

    convs, lin = init_params(k_param)
    params_packed = pack_params(convs, lin)      # packed once, reused per call

    out = gcn2_forward(x, edge_index, edge_weight, batch, num_graphs,
                       params_packed)
    out = jax.block_until_ready(out)
    assert out.shape == (num_graphs, 2)
    assert bool(jnp.all(jnp.isfinite(out)))
    print("KERNEL_OK")
</pallas_src>

<mosaic_0001>
module attributes {stable_mosaic.version = 11 : i64} {
  func.func private @main(%arg0: i32) attributes {dimension_semantics = [#tpu.dimension_semantics<core_parallel>], iteration_bounds = array<i64: 2>, tpu.core_type = #tpu.core_type<sc_scalar_subcore>, window_params = []} {
    return
  }
}

module attributes {stable_mosaic.version = 11 : i64} {
  func.func private @main(%arg0: i32) attributes {dimension_semantics = [#tpu.dimension_semantics<core_parallel>], iteration_bounds = array<i64: 2>, tpu.core_type = #tpu.core_type<sc_scalar_subcore>, window_params = []} {
    return
  }
}

module attributes {stable_mosaic.version = 11 : i64} {
  func.func @_gcn2_fused_kernel(%arg0: memref<12x12xf32, #tpu.memory_space<vmem>>, %arg1: memref<12x1xf32, #tpu.memory_space<vmem>>, %arg2: memref<2x12xf32, #tpu.memory_space<vmem>>, %arg3: memref<360x128xf32, #tpu.memory_space<vmem>>, %arg4: memref<2x2xf32, #tpu.memory_space<vmem>>) attributes {dimension_semantics = [], scalar_prefetch = 0 : i64, scratch_operands = 0 : i64, tpu.core_type = #tpu.core_type<tc>} {
    %c0 = arith.constant 0 : index
    %c0_0 = arith.constant 0 : index
    %0 = vector.load %arg0[%c0, %c0_0] : memref<12x12xf32, #tpu.memory_space<vmem>>, vector<12x12xf32>
    %c0_1 = arith.constant 0 : index
    %c0_2 = arith.constant 0 : index
    %1 = vector.load %arg1[%c0_1, %c0_2] : memref<12x1xf32, #tpu.memory_space<vmem>>, vector<12x1xf32>
    %cst = arith.constant dense<0.000000e+00> : vector<12x1xf32>
    %2 = tpu.matmul %0, %1, %cst {dimension_numbers = #tpu.dot_dimension_numbers<[1], [0], [0], [1], [0, 0, 1, 1], [], []>} : vector<12x12xf32>, vector<12x1xf32>, vector<12x1xf32> -> vector<12x1xf32>
    %c0_3 = arith.constant 0 : index
    %c0_4 = arith.constant 0 : index
    %3 = vector.load %arg3[%c0_3, %c0_4] : memref<360x128xf32, #tpu.memory_space<vmem>>, vector<1x64xf32>
    %4 = vector.broadcast %2 : vector<12x1xf32> to vector<12x64xf32>
    %5 = vector.broadcast %3 : vector<1x64xf32> to vector<12x64xf32>
    %6 = arith.mulf %4, %5 : vector<12x64xf32>
    %c8 = arith.constant 8 : index
    %c0_5 = arith.constant 0 : index
    %7 = vector.load %arg3[%c8, %c0_5] : memref<360x128xf32, #tpu.memory_space<vmem>>, vector<1x64xf32>
    %8 = vector.broadcast %7 : vector<1x64xf32> to vector<12x64xf32>
    %9 = arith.addf %6, %8 : vector<12x64xf32>
    %cst_6 = arith.constant 0.000000e+00 : f32
    %10 = vector.broadcast %cst_6 : f32 to vector<12x64xf32>
    %11 = arith.maximumf %9, %10 : vector<12x64xf32>
    %c16 = arith.constant 16 : index
    %c0_7 = arith.constant 0 : index
    %12 = vector.load %arg3[%c16, %c0_7] : memref<360x128xf32, #tpu.memory_space<vmem>>, vector<64x64xf32>
    %cst_8 = arith.constant dense<0.000000e+00> : vector<12x64xf32>
    %13 = tpu.matmul %11, %12, %cst_8 {dimension_numbers = #tpu.dot_dimension_numbers<[1], [0], [0], [1], [0, 0, 1, 1], [], []>} : vector<12x64xf32>, vector<64x64xf32>, vector<12x64xf32> -> vector<12x64xf32>
    %cst_9 = arith.constant dense<0.000000e+00> : vector<12x64xf32>
    %14 = tpu.matmul %0, %13, %cst_9 {dimension_numbers = #tpu.dot_dimension_numbers<[1], [0], [0], [1], [0, 0, 1, 1], [], []>} : vector<12x12xf32>, vector<12x64xf32>, vector<12x64xf32> -> vector<12x64xf32>
    %c80 = arith.constant 80 : index
    %c0_10 = arith.constant 0 : index
    %15 = vector.load %arg3[%c80, %c0_10] : memref<360x128xf32, #tpu.memory_space<vmem>>, vector<1x64xf32>
    %16 = vector.broadcast %15 : vector<1x64xf32> to vector<12x64xf32>
    %17 = arith.addf %14, %16 : vector<12x64xf32>
    %cst_11 = arith.constant 0.000000e+00 : f32
    %18 = vector.broadcast %cst_11 : f32 to vector<12x64xf32>
    %19 = arith.maximumf %17, %18 : vector<12x64xf32>
    %c88 = arith.constant 88 : index
    %c0_12 = arith.constant 0 : index
    %20 = vector.load %arg3[%c88, %c0_12] : memref<360x128xf32, #tpu.memory_space<vmem>>, vector<64x64xf32>
    %cst_13 = arith.constant dense<0.000000e+00> : vector<12x64xf32>
    %21 = tpu.matmul %19, %20, %cst_13 {dimension_numbers = #tpu.dot_dimension_numbers<[1], [0], [0], [1], [0, 0, 1, 1], [], []>} : vector<12x64xf32>, vector<64x64xf32>, vector<12x64xf32> -> vector<12x64xf32>
    %cst_14 = arith.constant dense<0.000000e+00> : vector<12x64xf32>
    %22 = tpu.matmul %0, %21, %cst_14 {dimension_numbers = #tpu.dot_dimension_numbers<[1], [0], [0], [1], [0, 0, 1, 1], [], []>} : vector<12x12xf32>, vector<12x64xf32>, vector<12x64xf32> -> vector<12x64xf32>
    %c152 = arith.constant 152 : index
    %c0_15 = arith.constant 0 : index
    %23 = vector.load %arg3[%c152, %c0_15] : memref<360x128xf32, #tpu.memory_space<vmem>>, vector<1x64xf32>
    %24 = vector.broadcast %23 : vector<1x64xf32> to vector<12x64xf32>
    %25 = arith.addf %22, %24 : vector<12x64xf32>
    %cst_16 = arith.constant 0.000000e+00 : f32
    %26 = vector.broadcast %cst_16 : f32 to vector<12x64xf32>
    %27 = arith.maximumf %25, %26 : vector<12x64xf32>
    %c160 = arith.constant 160 : index
    %c0_17 = arith.constant 0 : index
    %28 = vector.load %arg3[%c160, %c0_17] : memref<360x128xf32, #tpu.memory_space<vmem>>, vector<64x32xf32>
    %cst_18 = arith.constant dense<0.000000e+00> : vector<12x32xf32>
    %29 = tpu.matmul %27, %28, %cst_18 {dimension_numbers = #tpu.dot_dimension_numbers<[1], [0], [0], [1], [0, 0, 1, 1], [], []>} : vector<12x64xf32>, vector<64x32xf32>, vector<12x32xf32> -> vector<12x32xf32>
    %cst_19 = arith.constant dense<0.000000e+00> : vector<12x32xf32>
    %30 = tpu.matmul %0, %29, %cst_19 {dimension_numbers = #tpu.dot_dimension_numbers<[1], [0], [0], [1], [0, 0, 1, 1], [], []>} : vector<12x12xf32>, vector<12x32xf32>, vector<12x32xf32> -> vector<12x32xf32>
    %c224 = arith.constant 224 : index
    %c0_20 = arith.constant 0 : index
    %31 = vector.load %arg3[%c224, %c0_20] : memref<360x128xf32, #tpu.memory_space<vmem>>, vector<1x32xf32>
    %32 = vector.broadcast %31 : vector<1x32xf32> to vector<12x32xf32>
    %33 = arith.addf %30, %32 : vector<12x32xf32>
    %cst_21 = arith.constant 0.000000e+00 : f32
    %34 = vector.broadcast %cst_21 : f32 to vector<12x32xf32>
    %35 = arith.maximumf %33, %34 : vector<12x32xf32>
    %c232 = arith.constant 232 : index
    %c0_22 = arith.constant 0 : index
    %36 = vector.load %arg3[%c232, %c0_22] : memref<360x128xf32, #tpu.memory_space<vmem>>, vector<32x32xf32>
    %cst_23 = arith.constant dense<0.000000e+00> : vector<12x32xf32>
    %37 = tpu.matmul %35, %36, %cst_23 {dimension_numbers = #tpu.dot_dimension_numbers<[1], [0], [0], [1], [0, 0, 1, 1], [], []>} : vector<12x32xf32>, vector<32x32xf32>, vector<12x32xf32> -> vector<12x32xf32>
    %cst_24 = arith.constant dense<0.000000e+00> : vector<12x32xf32>
    %38 = tpu.matmul %0, %37, %cst_24 {dimension_numbers = #tpu.dot_dimension_numbers<[1], [0], [0], [1], [0, 0, 1, 1], [], []>} : vector<12x12xf32>, vector<12x32xf32>, vector<12x32xf32> -> vector<12x32xf32>
    %c264 = arith.constant 264 : index
    %c0_25 = arith.constant 0 : index
    %39 = vector.load %arg3[%c264, %c0_25] : memref<360x128xf32, #tpu.memory_space<vmem>>, vector<1x32xf32>
    %40 = vector.broadcast %39 : vector<1x32xf32> to vector<12x32xf32>
    %41 = arith.addf %38, %40 : vector<12x32xf32>
    %cst_26 = arith.constant 0.000000e+00 : f32
    %42 = vector.broadcast %cst_26 : f32 to vector<12x32xf32>
    %43 = arith.maximumf %41, %42 : vector<12x32xf32>
    %c272 = arith.constant 272 : index
    %c0_27 = arith.constant 0 : index
    %44 = vector.load %arg3[%c272, %c0_27] : memref<360x128xf32, #tpu.memory_space<vmem>>, vector<32x16xf32>
    %cst_28 = arith.constant dense<0.000000e+00> : vector<12x16xf32>
    %45 = tpu.matmul %43, %44, %cst_28 {dimension_numbers = #tpu.dot_dimension_numbers<[1], [0], [0], [1], [0, 0, 1, 1], [], []>} : vector<12x32xf32>, vector<32x16xf32>, vector<12x16xf32> -> vector<12x16xf32>
    %cst_29 = arith.constant dense<0.000000e+00> : vector<12x16xf32>
    %46 = tpu.matmul %0, %45, %cst_29 {dimension_numbers = #tpu.dot_dimension_numbers<[1], [0], [0], [1], [0, 0, 1, 1], [], []>} : vector<12x12xf32>, vector<12x16xf32>, vector<12x16xf32> -> vector<12x16xf32>
    %c304 = arith.constant 304 : index
    %c0_30 = arith.constant 0 : index
    %47 = vector.load %arg3[%c304, %c0_30] : memref<360x128xf32, #tpu.memory_space<vmem>>, vector<1x16xf32>
    %48 = vector.broadcast %47 : vector<1x16xf32> to vector<12x16xf32>
    %49 = arith.addf %46, %48 : vector<12x16xf32>
    %cst_31 = arith.constant 0.000000e+00 : f32
    %50 = vector.broadcast %cst_31 : f32 to vector<12x16xf32>
    %51 = arith.maximumf %49, %50 : vector<12x16xf32>
    %c0_32 = arith.constant 0 : index
    %c0_33 = arith.constant 0 : index
    %52 = vector.load %arg2[%c0_32, %c0_33] : memref<2x12xf32, #tpu.memory_space<vmem>>, vector<2x12xf32>
    %53 = vector.shape_cast %52 : vector<2x12xf32> to vector<2x12x1xf32>
    %cst_34 = arith.constant 0.000000e+00 : f32
    %54 = vector.broadcast %cst_34 : f32 to vector<2x12x1xf32>
    %55 = arith.cmpf ogt, %53, %54 : vector<2x12x1xf32>
    %56 = vector.shape_cast %51 : vector<12x16xf32> to vector<1x12x16xf32>
    %cst_35 = arith.constant -1.000000e+30 : f32
    %57 = vector.shape_cast %55 : vector<2x12x1xi1> to vector<2x12x1xi1>
    %58 = vector.broadcast %57 : vector<2x12x1xi1> to vector<2x12x16xi1>
    %59 = vector.shape_cast %56 : vector<1x12x16xf32> to vector<1x12x16xf32>
    %60 = vector.broadcast %59 : vector<1x12x16xf32> to vector<2x12x16xf32>
    %61 = vector.broadcast %cst_35 : f32 to vector<2x12x16xf32>
    %62 = arith.select %58, %60, %61 : vector<2x12x16xi1>, vector<2x12x16xf32>
    %cst_36 = arith.constant dense<0xFF800000> : vector<2x16xf32>
    %63 = vector.multi_reduction <maximumf>, %62, %cst_36 [1] : vector<2x12x16xf32> to vector<2x16xf32>
    %cst_37 = arith.constant dense<0.000000e+00> : vector<2xf32>
    %64 = vector.multi_reduction <add>, %52, %cst_37 [1] : vector<2x12xf32> to vector<2xf32>
    %65 = vector.shape_cast %64 : vector<2xf32> to vector<2x1xf32>
    %cst_38 = arith.constant 0.000000e+00 : f32
    %66 = vector.broadcast %cst_38 : f32 to vector<2x1xf32>
    %67 = arith.cmpf ogt, %65, %66 : vector<2x1xf32>
    %cst_39 = arith.constant 0.000000e+00 : f32
    %68 = vector.shape_cast %67 : vector<2x1xi1> to vector<2x1xi1>
    %69 = vector.broadcast %68 : vector<2x1xi1> to vector<2x16xi1>
    %70 = vector.broadcast %cst_39 : f32 to vector<2x16xf32>
    %71 = arith.select %69, %63, %70 : vector<2x16xi1>, vector<2x16xf32>
    %c312 = arith.constant 312 : index
    %c0_40 = arith.constant 0 : index
    %72 = vector.load %arg3[%c312, %c0_40] : memref<360x128xf32, #tpu.memory_space<vmem>>, vector<16x16xf32>
    %cst_41 = arith.constant dense<0.000000e+00> : vector<2x16xf32>
    %73 = tpu.matmul %71, %72, %cst_41 {dimension_numbers = #tpu.dot_dimension_numbers<[1], [0], [0], [1], [0, 0, 1, 1], [], []>} : vector<2x16xf32>, vector<16x16xf32>, vector<2x16xf32> -> vector<2x16xf32>
    %c328 = arith.constant 328 : index
    %c0_42 = arith.constant 0 : index
    %74 = vector.load %arg3[%c328, %c0_42] : memref<360x128xf32, #tpu.memory_space<vmem>>, vector<1x16xf32>
    %75 = vector.broadcast %74 : vector<1x16xf32> to vector<2x16xf32>
    %76 = arith.addf %73, %75 : vector<2x16xf32>
    %cst_43 = arith.constant 0.000000e+00 : f32
    %77 = vector.broadcast %cst_43 : f32 to vector<2x16xf32>
    %78 = arith.maximumf %76, %77 : vector<2x16xf32>
    %c336 = arith.constant 336 : index
    %c0_44 = arith.constant 0 : index
    %79 = vector.load %arg3[%c336, %c0_44] : memref<360x128xf32, #tpu.memory_space<vmem>>, vector<16x2xf32>
    %cst_45 = arith.constant dense<0.000000e+00> : vector<2x2xf32>
    %80 = tpu.matmul %78, %79, %cst_45 {dimension_numbers = #tpu.dot_dimension_numbers<[1], [0], [0], [1], [0, 0, 1, 1], [], []>} : vector<2x16xf32>, vector<16x2xf32>, vector<2x2xf32> -> vector<2x2xf32>
    %c352 = arith.constant 352 : index
    %c0_46 = arith.constant 0 : index
    %81 = vector.load %arg3[%c352, %c0_46] : memref<360x128xf32, #tpu.memory_space<vmem>>, vector<1x2xf32>
    %82 = vector.broadcast %81 : vector<1x2xf32> to vector<2x2xf32>
    %83 = arith.addf %80, %82 : vector<2x2xf32>
    %c0_47 = arith.constant 0 : index
    %c0_48 = arith.constant 0 : index
    %84 = vector.load %arg4[%c0_47, %c0_48] : memref<2x2xf32, #tpu.memory_space<vmem>>, vector<2x2xf32>
    tpu.vector_store %arg4[%c0_47, %c0_48], %83 {strides = array<i32>} : memref<2x2xf32, #tpu.memory_space<vmem>>, vector<2x2xf32>,
    return
  }
}

</mosaic_0001>

<llo_original>
// kernel: gcn2_forward.1
$region0: #{gcn2_forward.1}
  #allocation0 [shape = 'u32[]', space=smem, size = 0x4, offset = 0x4, fixed_abs, tag = 'smem constant byte address 0x4 - core index']
  #allocation1 [shape = 'u32[144,128]{1,0:T(1,128)}', space=vmem, size = 0x12000, scoped, tag = 'internal scratch']
  %s0 = inlined_call_operand.vmem [shape: f32[12,12], index: 0, kind: input, shape index: {}]
  %s1 = inlined_call_operand.vmem [shape: f32[12,1], index: 1, kind: input, shape index: {}]
  %s2 = inlined_call_operand.vmem [shape: f32[2,12], index: 2, kind: input, shape index: {}]
  %s3 = inlined_call_operand.vmem [shape: f32[360,128], index: 3, kind: input, shape index: {}]
  %s4 = inlined_call_operand.hbm [shape: f32[2,2], index: 4, kind: output, shape index: {}]
  %s5 = sld [smem:[#allocation0]]
  $region26: #{gcn2_forward.1} parent=0
    _
  %s7 = ssub.s32 1, %s5
  %s8 = scalar_select 0, %s7, %s5
  $region1: #{gcn2_forward.1} parent=0
    #allocation2 [shape = 'u8[1024]{0}', space=vmem, size = 0x400, scoped, tag = 'output window, operand 0, single buffered']
    #allocation3 [shape = 's32[1]{0}', space=sflag, size = 0x4, scoped, tag = 'scoped memory for gcn2_forward.1']
    %9 = vsyncpa [#allocation3], 0
    // Predicated region
    $region2: #{gcn2_forward.1} parent=1 // pred_check
      _
    $region3: #{gcn2_forward.1} parent=1 // pred_check_branch
      %11 = sbr.rel (0) target = $region5
    $region4: #{gcn2_forward.1} parent=1 // pred_region
      _
    $region5: #{gcn2_forward.1} parent=1 // pred_fallthru
      _
    // Predicated region
    $region6: #{gcn2_forward.1} parent=1 // pred_check
      _
    $region7: #{gcn2_forward.1} parent=1 // pred_check_branch
      %13 = sbr.rel (0) target = $region9
    $region8: #{gcn2_forward.1} parent=1 // pred_region
      _
    $region9: #{gcn2_forward.1} parent=1 // pred_fallthru
      _
    // Predicated region
    $region10: #{gcn2_forward.1} parent=1 // pred_check
      _
    $region11: #{gcn2_forward.1} parent=1 // pred_check_branch
      %15 = sbr.rel (0) target = $region13
    $region12: #{gcn2_forward.1} parent=1 // pred_region
      _
    $region13: #{gcn2_forward.1} parent=1 // pred_fallthru
      _
    // Predicated region
    $region14: #{gcn2_forward.1} parent=1 // pred_check
      _
    $region15: #{gcn2_forward.1} parent=1 // pred_check_branch
      %17 = sbr.rel (0) target = $region17
    $region16: #{gcn2_forward.1} parent=1 // pred_region
      _
    $region17: #{gcn2_forward.1} parent=1 // pred_fallthru
      _
    %v18 = vld [vmem:[%s0] sm:$0xff]
    %v19 = vld [vmem:[%s0 + $0x8] sm:$0xf]
    %v20 = vld [vmem:[%s1] sm:$0xff]
    %v21 = vld [vmem:[%s1 + $0x8] sm:$0xf]
    %vm22 = vcmask 97280
    %v24 = vsel %vm22, %v18, 0
    %v27 = vsel %vm22, %v19, 0
    %vm29 = vcmask 1043456
    %v31 = vsel %vm29, %v21, 0
    %33 = vmatprep.subr.mxu0 0.0
    %34 = vmatpush1.msra.mxu0 %v20
    %35 = vmatprep.subr.mxu0 0.0
    %36 = vmatpush1.msra.mxu0 %v31
    %37 = vmatprep.subr.mxu0 0.0
    %38 = vmatpush1.msra.mxu0 0.0
    %39 = vmatprep.subr.mxu0 0.0
    %40 = vmatpush1.msra.mxu0 0.0
    %41 = vmatprep.subr.mxu0 0.0
    %42 = vmatpush1.msra.mxu0 0.0
    %43 = vmatprep.subr.mxu0 0.0
    %44 = vmatpush1.msra.mxu0 0.0
    %45 = vmatprep.subr.mxu0 0.0
    %46 = vmatpush1.msra.mxu0 0.0
    %47 = vmatprep.subr.mxu0 0.0
    %48 = vmatpush1.msra.mxu0 0.0
    %49 = vmatprep.subr.mxu0 0.0
    %50 = vmatpush1.msra.mxu0 0.0
    %51 = vmatprep.subr.mxu0 0.0
    %52 = vmatpush1.msra.mxu0 0.0
    %53 = vmatprep.subr.mxu0 0.0
    %54 = vmatpush1.msra.mxu0 0.0
    %55 = vmatprep.subr.mxu0 0.0
    %56 = vmatpush1.msra.mxu0 0.0
    %57 = vmatprep.subr.mxu0 0.0
    %58 = vmatpush1.msra.mxu0 0.0
    %59 = vmatprep.subr.mxu0 0.0
    %60 = vmatpush1.msra.mxu0 0.0
    %61 = vmatprep.subr.mxu0 0.0
    %62 = vmatpush1.msra.mxu0 0.0
    %63 = vmatprep.subr.mxu0 0.0
    %64 = vmatpush1.msra.mxu0 0.0
    %65 = vmatprep.subr.mxu0 0.0
    %66 = vmatpush1.msra.mxu0 0.0
    %67 = vmatprep.subr.mxu0 0.0
    %68 = vmatpush1.msra.mxu0 0.0
    %69 = vmatprep.subr.mxu0 0.0
    %70 = vmatpush1.msra.mxu0 0.0
    %71 = vmatprep.subr.mxu0 0.0
    %72 = vmatpush1.msra.mxu0 0.0
    %73 = vmatprep.subr.mxu0 0.0
    %74 = vmatpush1.msra.mxu0 0.0
    %75 = vmatprep.subr.mxu0 0.0
    %76 = vmatpush1.msra.mxu0 0.0
    %77 = vmatprep.subr.mxu0 0.0
    %78 = vmatpush1.msra.mxu0 0.0
    %79 = vmatprep.subr.mxu0 0.0
    %80 = vmatpush1.msra.mxu0 0.0
    %81 = vmatprep.subr.mxu0 0.0
    %82 = vmatpush1.msra.mxu0 0.0
    %83 = vmatprep.subr.mxu0 0.0
    %84 = vmatpush1.msra.mxu0 0.0
    %85 = vmatprep.subr.mxu0 0.0
    %86 = vmatpush1.msra.mxu0 0.0
    %87 = vmatprep.subr.mxu0 0.0
    %88 = vmatpush1.msra.mxu0 0.0
    %89 = vmatprep.subr.mxu0 0.0
    %90 = vmatpush1.msra.mxu0 0.0
    %91 = vmatprep.subr.mxu0 0.0
    %92 = vmatpush1.msra.mxu0 0.0
    %93 = vmatprep.subr.mxu0 0.0
    %94 = vmatpush1.msra.mxu0 0.0
    %95 = vmatprep.subr.mxu0 0.0
    %96 = vmatpush1.msra.mxu0 0.0
    %97 = vmatprep.mubr.f32.mxu0 0.0
    %98 = vmatmul.mubr.f32.gmra.mrb[0].mxu0 %v24
    %v99 = vpop.f32.mrb[0].mxu0
    %v100 = vadd.f32 0.0, %v99
    %v101 = vpop.f32.mrb[0].mxu0
    %102 = vmatprep.mubr.f32.mxu0 0.0
    %103 = vmatmul.mubr.f32.gmra.mrb[0].mxu0 %v27
    %v104 = vpop.f32.mrb[0].mxu0
    %v105 = vadd.f32 0.0, %v104
    %v106 = vpop.f32.mrb[0].mxu0
    %107 = vdwg.mxu0
    %v108 = vld [vmem:[%s3] sm:$0x1]
    %110 = vset.pattern.permute.xlu0 0
    %111 = vperm.xlu0 %110, %v100
    %v112 = vpop.permute.xlu0 %111
    %115 = vset.pattern.permute.xlu0 0
    %116 = vperm.xlu0 %115, %v105
    %v117 = vpop.permute.xlu0 %116
    %v119 = vlaneseq
    %v120 = vshrl.u32 %v119, 7
    %v121 = vsub.s32 0, %v120
    %v122 = vrot.slane %v108, %v121
    %v123 = vmul.f32 %v112, %v122
    %v124 = vmul.f32 %v117, %v122
    %v125 = vld [vmem:[%s3 + $0x8] sm:$0x1]
    %v126 = vlaneseq
    %v127 = vshrl.u32 %v126, 7
    %v128 = vsub.s32 0, %v127
    %v129 = vrot.slane %v125, %v128
    %v130 = vadd.f32 %v123, %v129
    %v131 = vadd.f32 %v124, %v129
    %v132 = vmax.f32 %v130, 0.0
    %v133 = vmax.f32 %v131, 0.0
    %v134 = vld [vmem:[%s3 + $0x10] sm:$0xff]
    %v135 = vld [vmem:[%s3 + $0x18] sm:$0xff]
    %v136 = vld [vmem:[%s3 + $0x20] sm:$0xff]
    %v137 = vld [vmem:[%s3 + $0x28] sm:$0xff]
    %v138 = vld [vmem:[%s3 + $0x30] sm:$0xff]
    %v139 = vld [vmem:[%s3 + $0x38] sm:$0xff]
    %v140 = vld [vmem:[%s3 + $0x40] sm:$0xff]
    %v141 = vld [vmem:[%s3 + $0x48] sm:$0xff]
    %vm142 = vcmask 523264
    %v144 = vsel %vm142, %v132, 0
    %v147 = vsel %vm142, %v133, 0
    %149 = vmatprep.subr.mxu0 0.0
    %150 = vmatpush1.msra.mxu0 %v134
    %151 = vmatprep.subr.mxu0 0.0
    %152 = vmatpush1.msra.mxu0 %v135
    %153 = vmatprep.subr.mxu0 0.0
    %154 = vmatpush1.msra.mxu0 %v136
    %155 = vmatprep.subr.mxu0 0.0
    %156 = vmatpush1.msra.mxu0 %v137
    %157 = vmatprep.subr.mxu0 0.0
    %158 = vmatpush1.msra.mxu0 %v138
    %159 = vmatprep.subr.mxu0 0.0
    %160 = vmatpush1.msra.mxu0 %v139
    %161 = vmatprep.subr.mxu0 0.0
    %162 = vmatpush1.msra.mxu0 %v140
    %163 = vmatprep.subr.mxu0 0.0
    %164 = vmatpush1.msra.mxu0 %v141
    %165 = vmatprep.subr.mxu0 0.0
    %166 = vmatpush1.msra.mxu0 0.0
    %167 = vmatprep.subr.mxu0 0.0
    %168 = vmatpush1.msra.mxu0 0.0
    %169 = vmatprep.subr.mxu0 0.0
    %170 = vmatpush1.msra.mxu0 0.0
    %171 = vmatprep.subr.mxu0 0.0
    %172 = vmatpush1.msra.mxu0 0.0
    %173 = vmatprep.subr.mxu0 0.0
    %174 = vmatpush1.msra.mxu0 0.0
    %175 = vmatprep.subr.mxu0 0.0
    %176 = vmatpush1.msra.mxu0 0.0
    %177 = vmatprep.subr.mxu0 0.0
    %178 = vmatpush1.msra.mxu0 0.0
    %179 = vmatprep.subr.mxu0 0.0
    %180 = vmatpush1.msra.mxu0 0.0
    %181 = vmatprep.subr.mxu0 0.0
    %182 = vmatpush1.msra.mxu0 0.0
    %183 = vmatprep.subr.mxu0 0.0
    %184 = vmatpush1.msra.mxu0 0.0
    %185 = vmatprep.subr.mxu0 0.0
    %186 = vmatpush1.msra.mxu0 0.0
    %187 = vmatprep.subr.mxu0 0.0
    %188 = vmatpush1.msra.mxu0 0.0
    %189 = vmatprep.subr.mxu0 0.0
    %190 = vmatpush1.msra.mxu0 0.0
    %191 = vmatprep.subr.mxu0 0.0
    %192 = vmatpush1.msra.mxu0 0.0
    %193 = vmatprep.subr.mxu0 0.0
    %194 = vmatpush1.msra.mxu0 0.0
    %195 = vmatprep.subr.mxu0 0.0
    %196 = vmatpush1.msra.mxu0 0.0
    %197 = vmatprep.subr.mxu0 0.0
    %198 = vmatpush1.msra.mxu0 0.0
    %199 = vmatprep.subr.mxu0 0.0
    %200 = vmatpush1.msra.mxu0 0.0
    %201 = vmatprep.subr.mxu0 0.0
    %202 = vmatpush1.msra.mxu0 0.0
    %203 = vmatprep.subr.mxu0 0.0
    %204 = vmatpush1.msra.mxu0 0.0
    %205 = vmatprep.subr.mxu0 0.0
    %206 = vmatpush1.msra.mxu0 0.0
    %207 = vmatprep.subr.mxu0 0.0
    %208 = vmatpush1.msra.mxu0 0.0
    %209 = vmatprep.subr.mxu0 0.0
    %210 = vmatpush1.msra.mxu0 0.0
    %211 = vmatprep.subr.mxu0 0.0
    %212 = vmatpush1.msra.mxu0 0.0
    %213 = vmatprep.mubr.f32.mxu0 0.0
    %214 = vmatmul.mubr.f32.gmra.mrb[0].mxu0 %v144
    %v215 = vpop.f32.mrb[0].mxu0
    %v216 = vadd.f32 0.0, %v215
    %v217 = vpop.f32.mrb[0].mxu0
    %218 = vmatprep.mubr.f32.mxu0 0.0
    %219 = vmatmul.mubr.f32.gmra.mrb[0].mxu0 %v147
    %v220 = vpop.f32.mrb[0].mxu0
    %v221 = vadd.f32 0.0, %v220
    %v222 = vpop.f32.mrb[0].mxu0
    %223 = vdwg.mxu0
    %v224 = vld [vmem:[%s3 + $0x50] sm:$0x1]
    %v225 = vlaneseq
    %v226 = vshrl.u32 %v225, 7
    %v227 = vsub.s32 0, %v226
    %v228 = vrot.slane %v224, %v227
    %v230 = vsel %vm29, %v221, 0
    %232 = vmatprep.subr.mxu0 0.0
    %233 = vmatpush1.msra.mxu0 %v216
    %234 = vmatprep.subr.mxu0 0.0
    %235 = vmatpush1.msra.mxu0 %v230
    %236 = vmatprep.subr.mxu0 0.0
    %237 = vmatpush1.msra.mxu0 0.0
    %238 = vmatprep.subr.mxu0 0.0
    %239 = vmatpush1.msra.mxu0 0.0
    %240 = vmatprep.subr.mxu0 0.0
    %241 = vmatpush1.msra.mxu0 0.0
    %242 = vmatprep.subr.mxu0 0.0
    %243 = vmatpush1.msra.mxu0 0.0
    %244 = vmatprep.subr.mxu0 0.0
    %245 = vmatpush1.msra.mxu0 0.0
    %246 = vmatprep.subr.mxu0 0.0
    %247 = vmatpush1.msra.mxu0 0.0
    %248 = vmatprep.subr.mxu0 0.0
    %249 = vmatpush1.msra.mxu0 0.0
    %250 = vmatprep.subr.mxu0 0.0
    %251 = vmatpush1.msra.mxu0 0.0
    %252 = vmatprep.subr.mxu0 0.0
    %253 = vmatpush1.msra.mxu0 0.0
    %254 = vmatprep.subr.mxu0 0.0
    %255 = vmatpush1.msra.mxu0 0.0
    %256 = vmatprep.subr.mxu0 0.0
    %257 = vmatpush1.msra.mxu0 0.0
    %258 = vmatprep.subr.mxu0 0.0
    %259 = vmatpush1.msra.mxu0 0.0
    %260 = vmatprep.subr.mxu0 0.0
    %261 = vmatpush1.msra.mxu0 0.0
    %262 = vmatprep.subr.mxu0 0.0
    %263 = vmatpush1.msra.mxu0 0.0
    %264 = vmatprep.subr.mxu0 0.0
    %265 = vmatpush1.msra.mxu0 0.0
    %266 = vmatprep.subr.mxu0 0.0
    %267 = vmatpush1.msra.mxu0 0.0
    %268 = vmatprep.subr.mxu0 0.0
    %269 = vmatpush1.msra.mxu0 0.0
    %270 = vmatprep.subr.mxu0 0.0
    %271 = vmatpush1.msra.mxu0 0.0
    %272 = vmatprep.subr.mxu0 0.0
    %273 = vmatpush1.msra.mxu0 0.0
    %274 = vmatprep.subr.mxu0 0.0
    %275 = vmatpush1.msra.mxu0 0.0
    %276 = vmatprep.subr.mxu0 0.0
    %277 = vmatpush1.msra.mxu0 0.0
    %278 = vmatprep.subr.mxu0 0.0
    %279 = vmatpush1.msra.mxu0 0.0
    %280 = vmatprep.subr.mxu0 0.0
    %281 = vmatpush1.msra.mxu0 0.0
    %282 = vmatprep.subr.mxu0 0.0
    %283 = vmatpush1.msra.mxu0 0.0
    %284 = vmatprep.subr.mxu0 0.0
    %285 = vmatpush1.msra.mxu0 0.0
    %286 = vmatprep.subr.mxu0 0.0
    %287 = vmatpush1.msra.mxu0 0.0
    %288 = vmatprep.subr.mxu0 0.0
    %289 = vmatpush1.msra.mxu0 0.0
    %290 = vmatprep.subr.mxu0 0.0
    %291 = vmatpush1.msra.mxu0 0.0
    %292 = vmatprep.subr.mxu0 0.0
    %293 = vmatpush1.msra.mxu0 0.0
    %294 = vmatprep.subr.mxu0 0.0
    %295 = vmatpush1.msra.mxu0 0.0
    %296 = vmatprep.mubr.f32.mxu0 0.0
    %297 = vmatmul.mubr.f32.gmra.mrb[0].mxu0 %v24
    %v298 = vpop.f32.mrb[0].mxu0
    %v299 = vadd.f32 %v228, %v298
    %v300 = vpop.f32.mrb[0].mxu0
    %301 = vmatprep.mubr.f32.mxu0 0.0
    %302 = vmatmul.mubr.f32.gmra.mrb[0].mxu0 %v27
    %v303 = vpop.f32.mrb[0].mxu0
    %v304 = vadd.f32 %v228, %v303
    %v305 = vpop.f32.mrb[0].mxu0
    %306 = vdwg.mxu0
    %v307 = vmax.f32 %v299, 0.0
    %v308 = vmax.f32 %v304, 0.0
    %v309 = vld [vmem:[%s3 + $0x58] sm:$0xff]
    %v310 = vld [vmem:[%s3 + $0x60] sm:$0xff]
    %v311 = vld [vmem:[%s3 + $0x68] sm:$0xff]
    %v312 = vld [vmem:[%s3 + $0x70] sm:$0xff]
    %v313 = vld [vmem:[%s3 + $0x78] sm:$0xff]
    %v314 = vld [vmem:[%s3 + $0x80] sm:$0xff]
    %v315 = vld [vmem:[%s3 + $0x88] sm:$0xff]
    %v316 = vld [vmem:[%s3 + $0x90] sm:$0xff]
    %v318 = vsel %vm142, %v307, 0
    %v321 = vsel %vm142, %v308, 0
    %323 = vmatprep.subr.mxu0 0.0
    %324 = vmatpush1.msra.mxu0 %v309
    %325 = vmatprep.subr.mxu0 0.0
    %326 = vmatpush1.msra.mxu0 %v310
    %327 = vmatprep.subr.mxu0 0.0
    %328 = vmatpush1.msra.mxu0 %v311
    %329 = vmatprep.subr.mxu0 0.0
    %330 = vmatpush1.msra.mxu0 %v312
    %331 = vmatprep.subr.mxu0 0.0
    %332 = vmatpush1.msra.mxu0 %v313
    %333 = vmatprep.subr.mxu0 0.0
    %334 = vmatpush1.msra.mxu0 %v314
    %335 = vmatprep.subr.mxu0 0.0
    %336 = vmatpush1.msra.mxu0 %v315
    %337 = vmatprep.subr.mxu0 0.0
    %338 = vmatpush1.msra.mxu0 %v316
    %339 = vmatprep.subr.mxu0 0.0
    %340 = vmatpush1.msra.mxu0 0.0
    %341 = vmatprep.subr.mxu0 0.0
    %342 = vmatpush1.msra.mxu0 0.0
    %343 = vmatprep.subr.mxu0 0.0
    %344 = vmatpush1.msra.mxu0 0.0
    %345 = vmatprep.subr.mxu0 0.0
    %346 = vmatpush1.msra.mxu0 0.0
    %347 = vmatprep.subr.mxu0 0.0
    %348 = vmatpush1.msra.mxu0 0.0
    %349 = vmatprep.subr.mxu0 0.0
    %350 = vmatpush1.msra.mxu0 0.0
    %351 = vmatprep.subr.mxu0 0.0
    %352 = vmatpush1.msra.mxu0 0.0
    %353 = vmatprep.subr.mxu0 0.0
    %354 = vmatpush1.msra.mxu0 0.0
    %355 = vmatprep.subr.mxu0 0.0
    %356 = vmatpush1.msra.mxu0 0.0
    %357 = vmatprep.subr.mxu0 0.0
    %358 = vmatpush1.msra.mxu0 0.0
    %359 = vmatprep.subr.mxu0 0.0
    %360 = vmatpush1.msra.mxu0 0.0
    %361 = vmatprep.subr.mxu0 0.0
    %362 = vmatpush1.msra.mxu0 0.0
    %363 = vmatprep.subr.mxu0 0.0
    %364 = vmatpush1.msra.mxu0 0.0
    %365 = vmatprep.subr.mxu0 0.0
    %366 = vmatpush1.msra.mxu0 0.0
    %367 = vmatprep.subr.mxu0 0.0
    %368 = vmatpush1.msra.mxu0 0.0
    %369 = vmatprep.subr.mxu0 0.0
    %370 = vmatpush1.msra.mxu0 0.0
    %371 = vmatprep.subr.mxu0 0.0
    %372 = vmatpush1.msra.mxu0 0.0
    %373 = vmatprep.subr.mxu0 0.0
    %374 = vmatpush1.msra.mxu0 0.0
    %375 = vmatprep.subr.mxu0 0.0
    %376 = vmatpush1.msra.mxu0 0.0
    %377 = vmatprep.subr.mxu0 0.0
    %378 = vmatpush1.msra.mxu0 0.0
    %379 = vmatprep.subr.mxu0 0.0
    %380 = vmatpush1.msra.mxu0 0.0
    %381 = vmatprep.subr.mxu0 0.0
    %382 = vmatpush1.msra.mxu0 0.0
    %383 = vmatprep.subr.mxu0 0.0
    %384 = vmatpush1.msra.mxu0 0.0
    %385 = vmatprep.subr.mxu0 0.0
    %386 = vmatpush1.msra.mxu0 0.0
    %387 = vmatprep.mubr.f32.mxu0 0.0
    %388 = vmatmul.mubr.f32.gmra.mrb[0].mxu0 %v318
    %v389 = vpop.f32.mrb[0].mxu0
    %v390 = vadd.f32 0.0, %v389
    %v391 = vpop.f32.mrb[0].mxu0
    %392 = vmatprep.mubr.f32.mxu0 0.0
    %393 = vmatmul.mubr.f32.gmra.mrb[0].mxu0 %v321
    %v394 = vpop.f32.mrb[0].mxu0
    %v395 = vadd.f32 0.0, %v394
    %v396 = vpop.f32.mrb[0].mxu0
    %397 = vdwg.mxu0
    %v398 = vld [vmem:[%s3 + $0x98] sm:$0x1]
    %v399 = vlaneseq
    %v400 = vshrl.u32 %v399, 7
    %v401 = vsub.s32 0, %v400
    %v402 = vrot.slane %v398, %v401
    %v404 = vsel %vm29, %v395, 0
    %406 = vmatprep.subr.mxu0 0.0
    %407 = vmatpush1.msra.mxu0 %v390
    %408 = vmatprep.subr.mxu0 0.0
    %409 = vmatpush1.msra.mxu0 %v404
    %410 = vmatprep.subr.mxu0 0.0
    %411 = vmatpush1.msra.mxu0 0.0
    %412 = vmatprep.subr.mxu0 0.0
    %413 = vmatpush1.msra.mxu0 0.0
    %414 = vmatprep.subr.mxu0 0.0
    %415 = vmatpush1.msra.mxu0 0.0
    %416 = vmatprep.subr.mxu0 0.0
    %417 = vmatpush1.msra.mxu0 0.0
    %418 = vmatprep.subr.mxu0 0.0
    %419 = vmatpush1.msra.mxu0 0.0
    %420 = vmatprep.subr.mxu0 0.0
    %421 = vmatpush1.msra.mxu0 0.0
    %422 = vmatprep.subr.mxu0 0.0
    %423 = vmatpush1.msra.mxu0 0.0
    %424 = vmatprep.subr.mxu0 0.0
    %425 = vmatpush1.msra.mxu0 0.0
    %426 = vmatprep.subr.mxu0 0.0
    %427 = vmatpush1.msra.mxu0 0.0
    %428 = vmatprep.subr.mxu0 0.0
    %429 = vmatpush1.msra.mxu0 0.0
    %430 = vmatprep.subr.mxu0 0.0
    %431 = vmatpush1.msra.mxu0 0.0
    %432 = vmatprep.subr.mxu0 0.0
    %433 = vmatpush1.msra.mxu0 0.0
    %434 = vmatprep.subr.mxu0 0.0
    %435 = vmatpush1.msra.mxu0 0.0
    %436 = vmatprep.subr.mxu0 0.0
    %437 = vmatpush1.msra.mxu0 0.0
    %438 = vmatprep.subr.mxu0 0.0
    %439 = vmatpush1.msra.mxu0 0.0
    %440 = vmatprep.subr.mxu0 0.0
    %441 = vmatpush1.msra.mxu0 0.0
    %442 = vmatprep.subr.mxu0 0.0
    %443 = vmatpush1.msra.mxu0 0.0
    %444 = vmatprep.subr.mxu0 0.0
    %445 = vmatpush1.msra.mxu0 0.0
    %446 = vmatprep.subr.mxu0 0.0
    %447 = vmatpush1.msra.mxu0 0.0
    %448 = vmatprep.subr.mxu0 0.0
    %449 = vmatpush1.msra.mxu0 0.0
    %450 = vmatprep.subr.mxu0 0.0
    %451 = vmatpush1.msra.mxu0 0.0
    %452 = vmatprep.subr.mxu0 0.0
    %453 = vmatpush1.msra.mxu0 0.0
    %454 = vmatprep.subr.mxu0 0.0
    %455 = vmatpush1.msra.mxu0 0.0
    %456 = vmatprep.subr.mxu0 0.0
    %457 = vmatpush1.msra.mxu0 0.0
    %458 = vmatprep.subr.mxu0 0.0
    %459 = vmatpush1.msra.mxu0 0.0
    %460 = vmatprep.subr.mxu0 0.0
    %461 = vmatpush1.msra.mxu0 0.0
    %462 = vmatprep.subr.mxu0 0.0
    %463 = vmatpush1.msra.mxu0 0.0
    %464 = vmatprep.subr.mxu0 0.0
    %465 = vmatpush1.msra.mxu0 0.0
    %466 = vmatprep.subr.mxu0 0.0
    %467 = vmatpush1.msra.mxu0 0.0
    %468 = vmatprep.subr.mxu0 0.0
    %469 = vmatpush1.msra.mxu0 0.0
    %470 = vmatprep.mubr.f32.mxu0 0.0
    %471 = vmatmul.mubr.f32.gmra.mrb[0].mxu0 %v24
    %v472 = vpop.f32.mrb[0].mxu0
    %v473 = vadd.f32 %v402, %v472
    %v474 = vpop.f32.mrb[0].mxu0
    %475 = vmatprep.mubr.f32.mxu0 0.0
    %476 = vmatmul.mubr.f32.gmra.mrb[0].mxu0 %v27
    %v477 = vpop.f32.mrb[0].mxu0
    %v478 = vadd.f32 %v402, %v477
    %v479 = vpop.f32.mrb[0].mxu0
    %480 = vdwg.mxu0
    %v481 = vmax.f32 %v473, 0.0
    %v482 = vmax.f32 %v478, 0.0
    %v483 = vld [vmem:[%s3 + $0xa0] sm:$0xff]
    %v484 = vld [vmem:[%s3 + $0xa8] sm:$0xff]
    %v485 = vld [vmem:[%s3 + $0xb0] sm:$0xff]
    %v486 = vld [vmem:[%s3 + $0xb8] sm:$0xff]
    %v487 = vld [vmem:[%s3 + $0xc0] sm:$0xff]
    %v488 = vld [vmem:[%s3 + $0xc8] sm:$0xff]
    %v489 = vld [vmem:[%s3 + $0xd0] sm:$0xff]
    %v490 = vld [vmem:[%s3 + $0xd8] sm:$0xff]
    %v492 = vsel %vm142, %v481, 0
    %v495 = vsel %vm142, %v482, 0
    %497 = vmatprep.subr.mxu0 0.0
    %498 = vmatpush1.msra.mxu0 %v483
    %499 = vmatprep.subr.mxu0 0.0
    %500 = vmatpush1.msra.mxu0 %v484
    %501 = vmatprep.subr.mxu0 0.0
    %502 = vmatpush1.msra.mxu0 %v485
    %503 = vmatprep.subr.mxu0 0.0
    %504 = vmatpush1.msra.mxu0 %v486
    %505 = vmatprep.subr.mxu0 0.0
    %506 = vmatpush1.msra.mxu0 %v487
    %507 = vmatprep.subr.mxu0 0.0
    %508 = vmatpush1.msra.mxu0 %v488
    %509 = vmatprep.subr.mxu0 0.0
    %510 = vmatpush1.msra.mxu0 %v489
    %511 = vmatprep.subr.mxu0 0.0
    %512 = vmatpush1.msra.mxu0 %v490
    %513 = vmatprep.subr.mxu0 0.0
    %514 = vmatpush1.msra.mxu0 0.0
    %515 = vmatprep.subr.mxu0 0.0
    %516 = vmatpush1.msra.mxu0 0.0
    %517 = vmatprep.subr.mxu0 0.0
    %518 = vmatpush1.msra.mxu0 0.0
    %519 = vmatprep.subr.mxu0 0.0
    %520 = vmatpush1.msra.mxu0 0.0
    %521 = vmatprep.subr.mxu0 0.0
    %522 = vmatpush1.msra.mxu0 0.0
    %523 = vmatprep.subr.mxu0 0.0
    %524 = vmatpush1.msra.mxu0 0.0
    %525 = vmatprep.subr.mxu0 0.0
    %526 = vmatpush1.msra.mxu0 0.0
    %527 = vmatprep.subr.mxu0 0.0
    %528 = vmatpush1.msra.mxu0 0.0
    %529 = vmatprep.subr.mxu0 0.0
    %530 = vmatpush1.msra.mxu0 0.0
    %531 = vmatprep.subr.mxu0 0.0
    %532 = vmatpush1.msra.mxu0 0.0
    %533 = vmatprep.subr.mxu0 0.0
    %534 = vmatpush1.msra.mxu0 0.0
    %535 = vmatprep.subr.mxu0 0.0
    %536 = vmatpush1.msra.mxu0 0.0
    %537 = vmatprep.subr.mxu0 0.0
    %538 = vmatpush1.msra.mxu0 0.0
    %539 = vmatprep.subr.mxu0 0.0
    %540 = vmatpush1.msra.mxu0 0.0
    %541 = vmatprep.subr.mxu0 0.0
    %542 = vmatpush1.msra.mxu0 0.0
    %543 = vmatprep.subr.mxu0 0.0
    %544 = vmatpush1.msra.mxu0 0.0
    %545 = vmatprep.subr.mxu0 0.0
    %546 = vmatpush1.msra.mxu0 0.0
    %547 = vmatprep.subr.mxu0 0.0
    %548 = vmatpush1.msra.mxu0 0.0
    %549 = vmatprep.subr.mxu0 0.0
    %550 = vmatpush1.msra.mxu0 0.0
    %551 = vmatprep.subr.mxu0 0.0
    %552 = vmatpush1.msra.mxu0 0.0
    %553 = vmatprep.subr.mxu0 0.0
    %554 = vmatpush1.msra.mxu0 0.0
    %555 = vmatprep.subr.mxu0 0.0
    %556 = vmatpush1.msra.mxu0 0.0
    %557 = vmatprep.subr.mxu0 0.0
    %558 = vmatpush1.msra.mxu0 0.0
    %559 = vmatprep.subr.mxu0 0.0
    %560 = vmatpush1.msra.mxu0 0.0
    %561 = vmatprep.mubr.f32.mxu0 0.0
    %562 = vmatmul.mubr.f32.gmra.mrb[0].mxu0 %v492
    %v563 = vpop.f32.mrb[0].mxu0
    %v564 = vadd.f32 0.0, %v563
    %v565 = vpop.f32.mrb[0].mxu0
    %566 = vmatprep.mubr.f32.mxu0 0.0
    %567 = vmatmul.mubr.f32.gmra.mrb[0].mxu0 %v495
    %v568 = vpop.f32.mrb[0].mxu0
    %v569 = vadd.f32 0.0, %v568
    %v570 = vpop.f32.mrb[0].mxu0
    %571 = vdwg.mxu0
    %v572 = vld [vmem:[%s3 + $0xe0] sm:$0x1]
    %v573 = vlaneseq
    %v574 = vshrl.u32 %v573, 7
    %v575 = vsub.s32 0, %v574
    %v576 = vrot.slane %v572, %v575
    %v578 = vsel %vm29, %v569, 0
    %580 = vmatprep.subr.mxu0 0.0
    %581 = vmatpush1.msra.mxu0 %v564
    %582 = vmatprep.subr.mxu0 0.0
    %583 = vmatpush1.msra.mxu0 %v578
    %584 = vmatprep.subr.mxu0 0.0
    %585 = vmatpush1.msra.mxu0 0.0
    %586 = vmatprep.subr.mxu0 0.0
    %587 = vmatpush1.msra.mxu0 0.0
    %588 = vmatprep.subr.mxu0 0.0
    %589 = vmatpush1.msra.mxu0 0.0
    %590 = vmatprep.subr.mxu0 0.0
    %591 = vmatpush1.msra.mxu0 0.0
    %592 = vmatprep.subr.mxu0 0.0
    %593 = vmatpush1.msra.mxu0 0.0
    %594 = vmatprep.subr.mxu0 0.0
    %595 = vmatpush1.msra.mxu0 0.0
    %596 = vmatprep.subr.mxu0 0.0
    %597 = vmatpush1.msra.mxu0 0.0
    %598 = vmatprep.subr.mxu0 0.0
    %599 = vmatpush1.msra.mxu0 0.0
    %600 = vmatprep.subr.mxu0 0.0
    %601 = vmatpush1.msra.mxu0 0.0
    %602 = vmatprep.subr.mxu0 0.0
    %603 = vmatpush1.msra.mxu0 0.0
    %604 = vmatprep.subr.mxu0 0.0
    %605 = vmatpush1.msra.mxu0 0.0
    %606 = vmatprep.subr.mxu0 0.0
    %607 = vmatpush1.msra.mxu0 0.0
    %608 = vmatprep.subr.mxu0 0.0
    %609 = vmatpush1.msra.mxu0 0.0
    %610 = vmatprep.subr.mxu0 0.0
    %611 = vmatpush1.msra.mxu0 0.0
    %612 = vmatprep.subr.mxu0 0.0
    %613 = vmatpush1.msra.mxu0 0.0
    %614 = vmatprep.subr.mxu0 0.0
    %615 = vmatpush1.msra.mxu0 0.0
    %616 = vmatprep.subr.mxu0 0.0
    %617 = vmatpush1.msra.mxu0 0.0
    %618 = vmatprep.subr.mxu0 0.0
    %619 = vmatpush1.msra.mxu0 0.0
    %620 = vmatprep.subr.mxu0 0.0
    %621 = vmatpush1.msra.mxu0 0.0
    %622 = vmatprep.subr.mxu0 0.0
    %623 = vmatpush1.msra.mxu0 0.0
    %624 = vmatprep.subr.mxu0 0.0
    %625 = vmatpush1.msra.mxu0 0.0
    %626 = vmatprep.subr.mxu0 0.0
    %627 = vmatpush1.msra.mxu0 0.0
    %628 = vmatprep.subr.mxu0 0.0
    %629 = vmatpush1.msra.mxu0 0.0
    %630 = vmatprep.subr.mxu0 0.0
    %631 = vmatpush1.msra.mxu0 0.0
    %632 = vmatprep.subr.mxu0 0.0
    %633 = vmatpush1.msra.mxu0 0.0
    %634 = vmatprep.subr.mxu0 0.0
    %635 = vmatpush1.msra.mxu0 0.0
    %636 = vmatprep.subr.mxu0 0.0
    %637 = vmatpush1.msra.mxu0 0.0
    %638 = vmatprep.subr.mxu0 0.0
    %639 = vmatpush1.msra.mxu0 0.0
    %640 = vmatprep.subr.mxu0 0.0
    %641 = vmatpush1.msra.mxu0 0.0
    %642 = vmatprep.subr.mxu0 0.0
    %643 = vmatpush1.msra.mxu0 0.0
    %644 = vmatprep.mubr.f32.mxu0 0.0
    %645 = vmatmul.mubr.f32.gmra.mrb[0].mxu0 %v24
    %v646 = vpop.f32.mrb[0].mxu0
    %v647 = vadd.f32 %v576, %v646
    %v648 = vpop.f32.mrb[0].mxu0
    %649 = vmatprep.mubr.f32.mxu0 0.0
    %650 = vmatmul.mubr.f32.gmra.mrb[0].mxu0 %v27
    %v651 = vpop.f32.mrb[0].mxu0
    %v652 = vadd.f32 %v576, %v651
    %v653 = vpop.f32.mrb[0].mxu0
    %654 = vdwg.mxu0
    %v655 = vmax.f32 %v647, 0.0
    %v656 = vmax.f32 %v652, 0.0
    %v657 = vld [vmem:[%s3 + $0xe8] sm:$0xff]
    %v658 = vld [vmem:[%s3 + $0xf0] sm:$0xff]
    %v659 = vld [vmem:[%s3 + $0xf8] sm:$0xff]
    %v660 = vld [vmem:[%s3 + $0x100] sm:$0xff]
    %vm661 = vcmask 261120
    %v663 = vsel %vm661, %v655, 0
    %v666 = vsel %vm661, %v656, 0
    %668 = vmatprep.subr.mxu0 0.0
    %669 = vmatpush1.msra.mxu0 %v657
    %670 = vmatprep.subr.mxu0 0.0
    %671 = vmatpush1.msra.mxu0 %v658
    %672 = vmatprep.subr.mxu0 0.0
    %673 = vmatpush1.msra.mxu0 %v659
    %674 = vmatprep.subr.mxu0 0.0
    %675 = vmatpush1.msra.mxu0 %v660
    %676 = vmatprep.subr.mxu0 0.0
    %677 = vmatpush1.msra.mxu0 0.0
    %678 = vmatprep.subr.mxu0 0.0
    %679 = vmatpush1.msra.mxu0 0.0
    %680 = vmatprep.subr.mxu0 0.0
    %681 = vmatpush1.msra.mxu0 0.0
    %682 = vmatprep.subr.mxu0 0.0
    %683 = vmatpush1.msra.mxu0 0.0
    %684 = vmatprep.subr.mxu0 0.0
    %685 = vmatpush1.msra.mxu0 0.0
    %686 = vmatprep.subr.mxu0 0.0
    %687 = vmatpush1.msra.mxu0 0.0
    %688 = vmatprep.subr.mxu0 0.0
    %689 = vmatpush1.msra.mxu0 0.0
    %690 = vmatprep.subr.mxu0 0.0
    %691 = vmatpush1.msra.mxu0 0.0
    %692 = vmatprep.subr.mxu0 0.0
    %693 = vmatpush1.msra.mxu0 0.0
    %694 = vmatprep.subr.mxu0 0.0
    %695 = vmatpush1.msra.mxu0 0.0
    %696 = vmatprep.subr.mxu0 0.0
    %697 = vmatpush1.msra.mxu0 0.0
    %698 = vmatprep.subr.mxu0 0.0
    %699 = vmatpush1.msra.mxu0 0.0
    %700 = vmatprep.subr.mxu0 0.0
    %701 = vmatpush1.msra.mxu0 0.0
    %702 = vmatprep.subr.mxu0 0.0
    %703 = vmatpush1.msra.mxu0 0.0
    %704 = vmatprep.subr.mxu0 0.0
    %705 = vmatpush1.msra.mxu0 0.0
    %706 = vmatprep.subr.mxu0 0.0
    %707 = vmatpush1.msra.mxu0 0.0
    %708 = vmatprep.subr.mxu0 0.0
    %709 = vmatpush1.msra.mxu0 0.0
    %710 = vmatprep.subr.mxu0 0.0
    %711 = vmatpush1.msra.mxu0 0.0
    %712 = vmatprep.subr.mxu0 0.0
    %713 = vmatpush1.msra.mxu0 0.0
    %714 = vmatprep.subr.mxu0 0.0
    %715 = vmatpush1.msra.mxu0 0.0
    %716 = vmatprep.subr.mxu0 0.0
    %717 = vmatpush1.msra.mxu0 0.0
    %718 = vmatprep.subr.mxu0 0.0
    %719 = vmatpush1.msra.mxu0 0.0
    %720 = vmatprep.subr.mxu0 0.0
    %721 = vmatpush1.msra.mxu0 0.0
    %722 = vmatprep.subr.mxu0 0.0
    %723 = vmatpush1.msra.mxu0 0.0
    %724 = vmatprep.subr.mxu0 0.0
    %725 = vmatpush1.msra.mxu0 0.0
    %726 = vmatprep.subr.mxu0 0.0
    %727 = vmatpush1.msra.mxu0 0.0
    %728 = vmatprep.subr.mxu0 0.0
    %729 = vmatpush1.msra.mxu0 0.0
    %730 = vmatprep.subr.mxu0 0.0
    %731 = vmatpush1.msra.mxu0 0.0
    %732 = vmatprep.mubr.f32.mxu0 0.0
    %733 = vmatmul.mubr.f32.gmra.mrb[0].mxu0 %v663
    %v734 = vpop.f32.mrb[0].mxu0
    %v735 = vadd.f32 0.0, %v734
    %v736 = vpop.f32.mrb[0].mxu0
    %737 = vmatprep.mubr.f32.mxu0 0.0
    %738 = vmatmul.mubr.f32.gmra.mrb[0].mxu0 %v666
    %v739 = vpop.f32.mrb[0].mxu0
    %v740 = vadd.f32 0.0, %v739
    %v741 = vpop.f32.mrb[0].mxu0
    %742 = vdwg.mxu0
    %v743 = vld [vmem:[%s3 + $0x108] sm:$0x1]
    %v744 = vlaneseq
    %v745 = vshrl.u32 %v744, 7
    %v746 = vsub.s32 0, %v745
    %v747 = vrot.slane %v743, %v746
    %v749 = vsel %vm29, %v740, 0
    %751 = vmatprep.subr.mxu0 0.0
    %752 = vmatpush1.msra.mxu0 %v735
    %753 = vmatprep.subr.mxu0 0.0
    %754 = vmatpush1.msra.mxu0 %v749
    %755 = vmatprep.subr.mxu0 0.0
    %756 = vmatpush1.msra.mxu0 0.0
    %757 = vmatprep.subr.mxu0 0.0
    %758 = vmatpush1.msra.mxu0 0.0
    %759 = vmatprep.subr.mxu0 0.0
    %760 = vmatpush1.msra.mxu0 0.0
    %761 = vmatprep.subr.mxu0 0.0
    %762 = vmatpush1.msra.mxu0 0.0
    %763 = vmatprep.subr.mxu0 0.0
    %764 = vmatpush1.msra.mxu0 0.0
    %765 = vmatprep.subr.mxu0 0.0
    %766 = vmatpush1.msra.mxu0 0.0
    %767 = vmatprep.subr.mxu0 0.0
    %768 = vmatpush1.msra.mxu0 0.0
    %769 = vmatprep.subr.mxu0 0.0
    %770 = vmatpush1.msra.mxu0 0.0
    %771 = vmatprep.subr.mxu0 0.0
    %772 = vmatpush1.msra.mxu0 0.0
    %773 = vmatprep.subr.mxu0 0.0
    %774 = vmatpush1.msra.mxu0 0.0
    %775 = vmatprep.subr.mxu0 0.0
    %776 = vmatpush1.msra.mxu0 0.0
    %777 = vmatprep.subr.mxu0 0.0
    %778 = vmatpush1.msra.mxu0 0.0
    %779 = vmatprep.subr.mxu0 0.0
    %780 = vmatpush1.msra.mxu0 0.0
    %781 = vmatprep.subr.mxu0 0.0
    %782 = vmatpush1.msra.mxu0 0.0
    %783 = vmatprep.subr.mxu0 0.0
    %784 = vmatpush1.msra.mxu0 0.0
    %785 = vmatprep.subr.mxu0 0.0
    %786 = vmatpush1.msra.mxu0 0.0
    %787 = vmatprep.subr.mxu0 0.0
    %788 = vmatpush1.msra.mxu0 0.0
    %789 = vmatprep.subr.mxu0 0.0
    %790 = vmatpush1.msra.mxu0 0.0
    %791 = vmatprep.subr.mxu0 0.0
    %792 = vmatpush1.msra.mxu0 0.0
    %793 = vmatprep.subr.mxu0 0.0
    %794 = vmatpush1.msra.mxu0 0.0
    %795 = vmatprep.subr.mxu0 0.0
    %796 = vmatpush1.msra.mxu0 0.0
    %797 = vmatprep.subr.mxu0 0.0
    %798 = vmatpush1.msra.mxu0 0.0
    %799 = vmatprep.subr.mxu0 0.0
    %800 = vmatpush1.msra.mxu0 0.0
    %801 = vmatprep.subr.mxu0 0.0
    %802 = vmatpush1.msra.mxu0 0.0
    %803 = vmatprep.subr.mxu0 0.0
    %804 = vmatpush1.msra.mxu0 0.0
    %805 = vmatprep.subr.mxu0 0.0
    %806 = vmatpush1.msra.mxu0 0.0
    %807 = vmatprep.subr.mxu0 0.0
    %808 = vmatpush1.msra.mxu0 0.0
    %809 = vmatprep.subr.mxu0 0.0
    %810 = vmatpush1.msra.mxu0 0.0
    %811 = vmatprep.subr.mxu0 0.0
    %812 = vmatpush1.msra.mxu0 0.0
    %813 = vmatprep.subr.mxu0 0.0
    %814 = vmatpush1.msra.mxu0 0.0
    %815 = vmatprep.mubr.f32.mxu0 0.0
    %816 = vmatmul.mubr.f32.gmra.mrb[0].mxu0 %v24
    %v817 = vpop.f32.mrb[0].mxu0
    %v818 = vadd.f32 %v747, %v817
    %v819 = vpop.f32.mrb[0].mxu0
    %820 = vmatprep.mubr.f32.mxu0 0.0
    %821 = vmatmul.mubr.f32.gmra.mrb[0].mxu0 %v27
    %v822 = vpop.f32.mrb[0].mxu0
    %v823 = vadd.f32 %v747, %v822
    %v824 = vpop.f32.mrb[0].mxu0
    %825 = vdwg.mxu0
    %v826 = vmax.f32 %v818, 0.0
    %v827 = vmax.f32 %v823, 0.0
    %v828 = vld [vmem:[%s3 + $0x110] sm:$0xff]
    %v829 = vld [vmem:[%s3 + $0x118] sm:$0xff]
    %v830 = vld [vmem:[%s3 + $0x120] sm:$0xff]
    %v831 = vld [vmem:[%s3 + $0x128] sm:$0xff]
    %v833 = vsel %vm661, %v826, 0
    %v836 = vsel %vm661, %v827, 0
    %838 = vmatprep.subr.mxu0 0.0
    %839 = vmatpush1.msra.mxu0 %v828
    %840 = vmatprep.subr.mxu0 0.0
    %841 = vmatpush1.msra.mxu0 %v829
    %842 = vmatprep.subr.mxu0 0.0
    %843 = vmatpush1.msra.mxu0 %v830
    %844 = vmatprep.subr.mxu0 0.0
    %845 = vmatpush1.msra.mxu0 %v831
    %846 = vmatprep.subr.mxu0 0.0
    %847 = vmatpush1.msra.mxu0 0.0
    %848 = vmatprep.subr.mxu0 0.0
    %849 = vmatpush1.msra.mxu0 0.0
    %850 = vmatprep.subr.mxu0 0.0
    %851 = vmatpush1.msra.mxu0 0.0
    %852 = vmatprep.subr.mxu0 0.0
    %853 = vmatpush1.msra.mxu0 0.0
    %854 = vmatprep.subr.mxu0 0.0
    %855 = vmatpush1.msra.mxu0 0.0
    %856 = vmatprep.subr.mxu0 0.0
    %857 = vmatpush1.msra.mxu0 0.0
    %858 = vmatprep.subr.mxu0 0.0
    %859 = vmatpush1.msra.mxu0 0.0
    %860 = vmatprep.subr.mxu0 0.0
    %861 = vmatpush1.msra.mxu0 0.0
    %862 = vmatprep.subr.mxu0 0.0
    %863 = vmatpush1.msra.mxu0 0.0
    %864 = vmatprep.subr.mxu0 0.0
    %865 = vmatpush1.msra.mxu0 0.0
    %866 = vmatprep.subr.mxu0 0.0
    %867 = vmatpush1.msra.mxu0 0.0
    %868 = vmatprep.subr.mxu0 0.0
    %869 = vmatpush1.msra.mxu0 0.0
    %870 = vmatprep.subr.mxu0 0.0
    %871 = vmatpush1.msra.mxu0 0.0
    %872 = vmatprep.subr.mxu0 0.0
    %873 = vmatpush1.msra.mxu0 0.0
    %874 = vmatprep.subr.mxu0 0.0
    %875 = vmatpush1.msra.mxu0 0.0
    %876 = vmatprep.subr.mxu0 0.0
    %877 = vmatpush1.msra.mxu0 0.0
    %878 = vmatprep.subr.mxu0 0.0
    %879 = vmatpush1.msra.mxu0 0.0
    %880 = vmatprep.subr.mxu0 0.0
    %881 = vmatpush1.msra.mxu0 0.0
    %882 = vmatprep.subr.mxu0 0.0
    %883 = vmatpush1.msra.mxu0 0.0
    %884 = vmatprep.subr.mxu0 0.0
    %885 = vmatpush1.msra.mxu0 0.0
    %886 = vmatprep.subr.mxu0 0.0
    %887 = vmatpush1.msra.mxu0 0.0
    %888 = vmatprep.subr.mxu0 0.0
    %889 = vmatpush1.msra.mxu0 0.0
    %890 = vmatprep.subr.mxu0 0.0
    %891 = vmatpush1.msra.mxu0 0.0
    %892 = vmatprep.subr.mxu0 0.0
    %893 = vmatpush1.msra.mxu0 0.0
    %894 = vmatprep.subr.mxu0 0.0
    %895 = vmatpush1.msra.mxu0 0.0
    %896 = vmatprep.subr.mxu0 0.0
    %897 = vmatpush1.msra.mxu0 0.0
    %898 = vmatprep.subr.mxu0 0.0
    %899 = vmatpush1.msra.mxu0 0.0
    %900 = vmatprep.subr.mxu0 0.0
    %901 = vmatpush1.msra.mxu0 0.0
    %902 = vmatprep.mubr.f32.mxu0 0.0
    %903 = vmatmul.mubr.f32.gmra.mrb[0].mxu0 %v833
    %v904 = vpop.f32.mrb[0].mxu0
    %v905 = vadd.f32 0.0, %v904
    %v906 = vpop.f32.mrb[0].mxu0
    %907 = vmatprep.mubr.f32.mxu0 0.0
    %908 = vmatmul.mubr.f32.gmra.mrb[0].mxu0 %v836
    %v909 = vpop.f32.mrb[0].mxu0
    %v910 = vadd.f32 0.0, %v909
    %v911 = vpop.f32.mrb[0].mxu0
    %912 = vdwg.mxu0
    %v913 = vld [vmem:[%s3 + $0x130] sm:$0x1]
    %v914 = vlaneseq
    %v915 = vshrl.u32 %v914, 7
    %v916 = vsub.s32 0, %v915
    %v917 = vrot.slane %v913, %v916
    %v919 = vsel %vm29, %v910, 0
    %921 = vmatprep.subr.mxu0 0.0
    %922 = vmatpush1.msra.mxu0 %v905
    %923 = vmatprep.subr.mxu0 0.0
    %924 = vmatpush1.msra.mxu0 %v919
    %925 = vmatprep.subr.mxu0 0.0
    %926 = vmatpush1.msra.mxu0 0.0
    %927 = vmatprep.subr.mxu0 0.0
    %928 = vmatpush1.msra.mxu0 0.0
    %929 = vmatprep.subr.mxu0 0.0
    %930 = vmatpush1.msra.mxu0 0.0
    %931 = vmatprep.subr.mxu0 0.0
    %932 = vmatpush1.msra.mxu0 0.0
    %933 = vmatprep.subr.mxu0 0.0
    %934 = vmatpush1.msra.mxu0 0.0
    %935 = vmatprep.subr.mxu0 0.0
    %936 = vmatpush1.msra.mxu0 0.0
    %937 = vmatprep.subr.mxu0 0.0
    %938 = vmatpush1.msra.mxu0 0.0
    %939 = vmatprep.subr.mxu0 0.0
    %940 = vmatpush1.msra.mxu0 0.0
    %941 = vmatprep.subr.mxu0 0.0
    %942 = vmatpush1.msra.mxu0 0.0
    %943 = vmatprep.subr.mxu0 0.0
    %944 = vmatpush1.msra.mxu0 0.0
    %945 = vmatprep.subr.mxu0 0.0
    %946 = vmatpush1.msra.mxu0 0.0
    %947 = vmatprep.subr.mxu0 0.0
    %948 = vmatpush1.msra.mxu0 0.0
    %949 = vmatprep.subr.mxu0 0.0
    %950 = vmatpush1.msra.mxu0 0.0
    %951 = vmatprep.subr.mxu0 0.0
    %952 = vmatpush1.msra.mxu0 0.0
    %953 = vmatprep.subr.mxu0 0.0
    %954 = vmatpush1.msra.mxu0 0.0
    %955 = vmatprep.subr.mxu0 0.0
    %956 = vmatpush1.msra.mxu0 0.0
    %957 = vmatprep.subr.mxu0 0.0
    %958 = vmatpush1.msra.mxu0 0.0
    %959 = vmatprep.subr.mxu0 0.0
    %960 = vmatpush1.msra.mxu0 0.0
    %961 = vmatprep.subr.mxu0 0.0
    %962 = vmatpush1.msra.mxu0 0.0
    %963 = vmatprep.subr.mxu0 0.0
    %964 = vmatpush1.msra.mxu0 0.0
    %965 = vmatprep.subr.mxu0 0.0
    %966 = vmatpush1.msra.mxu0 0.0
    %967 = vmatprep.subr.mxu0 0.0
    %968 = vmatpush1.msra.mxu0 0.0
    %969 = vmatprep.subr.mxu0 0.0
    %970 = vmatpush1.msra.mxu0 0.0
    %971 = vmatprep.subr.mxu0 0.0
    %972 = vmatpush1.msra.mxu0 0.0
    %973 = vmatprep.subr.mxu0 0.0
    %974 = vmatpush1.msra.mxu0 0.0
    %975 = vmatprep.subr.mxu0 0.0
    %976 = vmatpush1.msra.mxu0 0.0
    %977 = vmatprep.subr.mxu0 0.0
    %978 = vmatpush1.msra.mxu0 0.0
    %979 = vmatprep.subr.mxu0 0.0
    %980 = vmatpush1.msra.mxu0 0.0
    %981 = vmatprep.subr.mxu0 0.0
    %982 = vmatpush1.msra.mxu0 0.0
    %983 = vmatprep.subr.mxu0 0.0
    %984 = vmatpush1.msra.mxu0 0.0
    %985 = vmatprep.mubr.f32.mxu0 0.0
    %986 = vmatmul.mubr.f32.gmra.mrb[0].mxu0 %v24
    %v987 = vpop.f32.mrb[0].mxu0
    %v988 = vadd.f32 %v917, %v987
    %v989 = vpop.f32.mrb[0].mxu0
    %990 = vmatprep.mubr.f32.mxu0 0.0
    %991 = vmatmul.mubr.f32.gmra.mrb[0].mxu0 %v27
    %v992 = vpop.f32.mrb[0].mxu0
    %v993 = vadd.f32 %v917, %v992
    %v994 = vpop.f32.mrb[0].mxu0
    %995 = vdwg.mxu0
    %v996 = vmax.f32 %v988, 0.0
    %v997 = vmax.f32 %v993, 0.0
    %v998 = vld [vmem:[%s2] sm:$0x3]
    %v999 = vlaneseq
    %v1000 = vshrl.u32 %v999, 7
    %v1001 = vsub.s32 0, %v1000
    %v1002 = vrot.slane %v998, %v1001
    %1004 = vbcast.lane.b32.xlu0 %v1002, 256
    %v1005 = vpop.permute.xlu0 %1004
    %s1007 = sor.u32 256, 8
    %1008 = vbcast.lane.b32.xlu0 %v1002, %s1007
    %v1009 = vpop.permute.xlu0 %1008
    %v1010 = vlaneseq
    %v1011 = vshrl.u32 %v1010, 7
    %v1012 = vsub.s32 1, %v1011
    %v1013 = vrot.slane %v998, %v1012
    %1015 = vbcast.lane.b32.xlu0 %v1013, 256
    %v1016 = vpop.permute.xlu0 %1015
    %s1018 = sor.u32 256, 8
    %1019 = vbcast.lane.b32.xlu0 %v1013, %s1018
    %v1020 = vpop.permute.xlu0 %1019
    %vm1021 = vcmp.gt.f32.partialorder %v1005, 0.0
    %vm1022 = vcmp.gt.f32.partialorder %v1009, 0.0
    %vm1023 = vcmp.gt.f32.partialorder %v1016, 0.0
    %vm1024 = vcmp.gt.f32.partialorder %v1020, 0.0
    %v1025 = vsel %vm1021, 1, 0
    %v1026 = vsel %vm1022, 1, 0
    %v1027 = vsel %vm1023, 1, 0
    %v1028 = vsel %vm1024, 1, 0
    %vm1029 = vcmp.eq.s32.totalorder %v1025, 1
    %vm1030 = vcmp.eq.s32.totalorder %v1026, 1
    %vm1031 = vcmp.eq.s32.totalorder %v1027, 1
    %vm1032 = vcmp.eq.s32.totalorder %v1028, 1
    %v1033 = vsel %vm1029, %v996, -1e+30
    %v1034 = vsel %vm1030, %v997, -1e+30
    %v1035 = vsel %vm1031, %v996, -1e+30
    %v1036 = vsel %vm1032, %v997, -1e+30
    %vm1037 = vcmask 130048
    %v1038 = vsel %vm1037, %v1033, -inf
    %vm1039 = vcmask 125952
    %v1040 = vsel %vm1039, %v1034, -inf
    %v1041 = vmax.f32 %v1038, %v1040
    %v1042 = vrot.slane %v1041, 4
    %v1043 = vmax.f32 %v1041, %v1042
    %v1044 = vrot.slane %v1043, 2
    %v1045 = vmax.f32 %v1043, %v1044
    %v1046 = vrot.slane %v1045, 1
    %v1047 = vmax.f32 %v1045, %v1046
    %v1048 = vsel %vm1037, %v1035, -inf
    %v1049 = vsel %vm1039, %v1036, -inf
    %v1050 = vmax.f32 %v1048, %v1049
    %v1051 = vrot.slane %v1050, 4
    %v1052 = vmax.f32 %v1050, %v1051
    %v1053 = vrot.slane %v1052, 2
    %v1054 = vmax.f32 %v1052, %v1053
    %v1055 = vrot.slane %v1054, 1
    %v1056 = vmax.f32 %v1054, %v1055
    %vm1057 = vcmask 91136
    %v1058 = vsel %vm1057, %v998, 0.0
    %1059 = vadd.xlane.f32.xlu0 %v1058
    %v1060 = vpop.xlane.xlu0 %1059
    %vm1061 = vcmp.gt.f32.partialorder %v1060, 0.0
    %v1062 = vsel %vm1061, 1, 0
    %vm1063 = vcmp.eq.s32.totalorder %v1062, 1
    %vm1066 = vcmask 1041409
    %v1067 = vsel %vm1066, %v1056, %v1047
    %v1069 = vsel %vm1063, %v1067, 0.0
    %v1070 = vld [vmem:[%s3 + $0x138] sm:$0xff]
    %v1071 = vld [vmem:[%s3 + $0x140] sm:$0xff]
    %v1072 = vld [vmem:[%s3 + $0x148] sm:$0x1]
    %v1073 = vlaneseq
    %v1074 = vshrl.u32 %v1073, 7
    %v1075 = vsub.s32 0, %v1074
    %v1076 = vrot.slane %v1072, %v1075
    %v1078 = vsel %vm1037, %v1069, 0
    %1080 = vmatprep.subr.mxu0 0.0
    %1081 = vmatpush1.msra.mxu0 %v1070
    %1082 = vmatprep.subr.mxu0 0.0
    %1083 = vmatpush1.msra.mxu0 %v1071
    %1084 = vmatprep.subr.mxu0 0.0
    %1085 = vmatpush1.msra.mxu0 0.0
    %1086 = vmatprep.subr.mxu0 0.0
    %1087 = vmatpush1.msra.mxu0 0.0
    %1088 = vmatprep.subr.mxu0 0.0
    %1089 = vmatpush1.msra.mxu0 0.0
    %1090 = vmatprep.subr.mxu0 0.0
    %1091 = vmatpush1.msra.mxu0 0.0
    %1092 = vmatprep.subr.mxu0 0.0
    %1093 = vmatpush1.msra.mxu0 0.0
    %1094 = vmatprep.subr.mxu0 0.0
    %1095 = vmatpush1.msra.mxu0 0.0
    %1096 = vmatprep.subr.mxu0 0.0
    %1097 = vmatpush1.msra.mxu0 0.0
    %1098 = vmatprep.subr.mxu0 0.0
    %1099 = vmatpush1.msra.mxu0 0.0
    %1100 = vmatprep.subr.mxu0 0.0
    %1101 = vmatpush1.msra.mxu0 0.0
    %1102 = vmatprep.subr.mxu0 0.0
    %1103 = vmatpush1.msra.mxu0 0.0
    %1104 = vmatprep.subr.mxu0 0.0
    %1105 = vmatpush1.msra.mxu0 0.0
    %1106 = vmatprep.subr.mxu0 0.0
    %1107 = vmatpush1.msra.mxu0 0.0
    %1108 = vmatprep.subr.mxu0 0.0
    %1109 = vmatpush1.msra.mxu0 0.0
    %1110 = vmatprep.subr.mxu0 0.0
    %1111 = vmatpush1.msra.mxu0 0.0
    %1112 = vmatprep.subr.mxu0 0.0
    %1113 = vmatpush1.msra.mxu0 0.0
    %1114 = vmatprep.subr.mxu0 0.0
    %1115 = vmatpush1.msra.mxu0 0.0
    %1116 = vmatprep.subr.mxu0 0.0
    %1117 = vmatpush1.msra.mxu0 0.0
    %1118 = vmatprep.subr.mxu0 0.0
    %1119 = vmatpush1.msra.mxu0 0.0
    %1120 = vmatprep.subr.mxu0 0.0
    %1121 = vmatpush1.msra.mxu0 0.0
    %1122 = vmatprep.subr.mxu0 0.0
    %1123 = vmatpush1.msra.mxu0 0.0
    %1124 = vmatprep.subr.mxu0 0.0
    %1125 = vmatpush1.msra.mxu0 0.0
    %1126 = vmatprep.subr.mxu0 0.0
    %1127 = vmatpush1.msra.mxu0 0.0
    %1128 = vmatprep.subr.mxu0 0.0
    %1129 = vmatpush1.msra.mxu0 0.0
    %1130 = vmatprep.subr.mxu0 0.0
    %1131 = vmatpush1.msra.mxu0 0.0
    %1132 = vmatprep.subr.mxu0 0.0
    %1133 = vmatpush1.msra.mxu0 0.0
    %1134 = vmatprep.subr.mxu0 0.0
    %1135 = vmatpush1.msra.mxu0 0.0
    %1136 = vmatprep.subr.mxu0 0.0
    %1137 = vmatpush1.msra.mxu0 0.0
    %1138 = vmatprep.subr.mxu0 0.0
    %1139 = vmatpush1.msra.mxu0 0.0
    %1140 = vmatprep.subr.mxu0 0.0
    %1141 = vmatpush1.msra.mxu0 0.0
    %1142 = vmatprep.subr.mxu0 0.0
    %1143 = vmatpush1.msra.mxu0 0.0
    %1144 = vmatprep.mubr.f32.mxu0 0.0
    %1145 = vmatmul.mubr.f32.gmra.mrb[0].mxu0 %v1078
    %v1146 = vpop.f32.mrb[0].mxu0
    %v1147 = vadd.f32 %v1076, %v1146
    %v1148 = vpop.f32.mrb[0].mxu0
    %1149 = vdwg.mxu0
    %v1150 = vmax.f32 %v1147, 0.0
    %v1151 = vld [vmem:[%s3 + $0x150] sm:$0xff]
    %v1152 = vld [vmem:[%s3 + $0x158] sm:$0xff]
    %v1153 = vld [vmem:[%s3 + $0x160] sm:$0x1]
    %v1154 = vlaneseq
    %v1155 = vshrl.u32 %v1154, 7
    %v1156 = vsub.s32 0, %v1155
    %v1157 = vrot.slane %v1153, %v1156
    %v1159 = vsel %vm1037, %v1150, 0
    %1161 = vmatprep.subr.mxu0 0.0
    %1162 = vmatpush1.msra.mxu0 %v1151
    %1163 = vmatprep.subr.mxu0 0.0
    %1164 = vmatpush1.msra.mxu0 %v1152
    %1165 = vmatprep.subr.mxu0 0.0
    %1166 = vmatpush1.msra.mxu0 0.0
    %1167 = vmatprep.subr.mxu0 0.0
    %1168 = vmatpush1.msra.mxu0 0.0
    %1169 = vmatprep.subr.mxu0 0.0
    %1170 = vmatpush1.msra.mxu0 0.0
    %1171 = vmatprep.subr.mxu0 0.0
    %1172 = vmatpush1.msra.mxu0 0.0
    %1173 = vmatprep.subr.mxu0 0.0
    %1174 = vmatpush1.msra.mxu0 0.0
    %1175 = vmatprep.subr.mxu0 0.0
    %1176 = vmatpush1.msra.mxu0 0.0
    %1177 = vmatprep.subr.mxu0 0.0
    %1178 = vmatpush1.msra.mxu0 0.0
    %1179 = vmatprep.subr.mxu0 0.0
    %1180 = vmatpush1.msra.mxu0 0.0
    %1181 = vmatprep.subr.mxu0 0.0
    %1182 = vmatpush1.msra.mxu0 0.0
    %1183 = vmatprep.subr.mxu0 0.0
    %1184 = vmatpush1.msra.mxu0 0.0
    %1185 = vmatprep.subr.mxu0 0.0
    %1186 = vmatpush1.msra.mxu0 0.0
    %1187 = vmatprep.subr.mxu0 0.0
    %1188 = vmatpush1.msra.mxu0 0.0
    %1189 = vmatprep.subr.mxu0 0.0
    %1190 = vmatpush1.msra.mxu0 0.0
    %1191 = vmatprep.subr.mxu0 0.0
    %1192 = vmatpush1.msra.mxu0 0.0
    %1193 = vmatprep.subr.mxu0 0.0
    %1194 = vmatpush1.msra.mxu0 0.0
    %1195 = vmatprep.subr.mxu0 0.0
    %1196 = vmatpush1.msra.mxu0 0.0
    %1197 = vmatprep.subr.mxu0 0.0
    %1198 = vmatpush1.msra.mxu0 0.0
    %1199 = vmatprep.subr.mxu0 0.0
    %1200 = vmatpush1.msra.mxu0 0.0
    %1201 = vmatprep.subr.mxu0 0.0
    %1202 = vmatpush1.msra.mxu0 0.0
    %1203 = vmatprep.subr.mxu0 0.0
    %1204 = vmatpush1.msra.mxu0 0.0
    %1205 = vmatprep.subr.mxu0 0.0
    %1206 = vmatpush1.msra.mxu0 0.0
    %1207 = vmatprep.subr.mxu0 0.0
    %1208 = vmatpush1.msra.mxu0 0.0
    %1209 = vmatprep.subr.mxu0 0.0
    %1210 = vmatpush1.msra.mxu0 0.0
    %1211 = vmatprep.subr.mxu0 0.0
    %1212 = vmatpush1.msra.mxu0 0.0
    %1213 = vmatprep.subr.mxu0 0.0
    %1214 = vmatpush1.msra.mxu0 0.0
    %1215 = vmatprep.subr.mxu0 0.0
    %1216 = vmatpush1.msra.mxu0 0.0
    %1217 = vmatprep.subr.mxu0 0.0
    %1218 = vmatpush1.msra.mxu0 0.0
    %1219 = vmatprep.subr.mxu0 0.0
    %1220 = vmatpush1.msra.mxu0 0.0
    %1221 = vmatprep.subr.mxu0 0.0
    %1222 = vmatpush1.msra.mxu0 0.0
    %1223 = vmatprep.subr.mxu0 0.0
    %1224 = vmatpush1.msra.mxu0 0.0
    %1225 = vmatprep.mubr.f32.mxu0 0.0
    %1226 = vmatmul.mubr.f32.gmra.mrb[0].mxu0 %v1159
    %v1227 = vpop.f32.mrb[0].mxu0
    %v1228 = vadd.f32 %v1157, %v1227
    %v1229 = vpop.f32.mrb[0].mxu0
    %1230 = vdwg.mxu0
    %vm1231 = vcmask 9216
    %1232 = vst.msk [vmem:[#allocation2] sm:$0x3] %vm1231, %v1228
    // Predicated region
    $region18: #{gcn2_forward.1} parent=1 // pred_check
      _
    $region19: #{gcn2_forward.1} parent=1 // pred_check_branch
      %1234 = sbr.rel (0) target = $region21
    $region20: #{gcn2_forward.1} parent=1 // pred_region
      %s1236 = ssub.s32 32, 32
      %1237 = vsyncadd [#allocation3], %s1236
      %s1239 = sshll.u32 [#allocation2], 4
      %s1240 = int_to_ptr.vmem [resolvable:$true] %s1239
      %1242 = dma.vmem_to_hbm [thread:$0]  %s1240, 32, %s4, [#allocation3]
    $region21: #{gcn2_forward.1} parent=1 // pred_fallthru
      _
    // Predicated region
    $region22: #{gcn2_forward.1} parent=1 // pred_check
      _
    $region23: #{gcn2_forward.1} parent=1 // pred_check_branch
      %1244 = sbr.rel (0) target = $region25
    $region24: #{gcn2_forward.1} parent=1 // pred_region
      %1245 = dma.done [#allocation3], 32
    $region25: #{gcn2_forward.1} parent=1 // pred_fallthru
      _
    %1246 = vsyncpa [#allocation3], 1

</llo_original>
